<compile_context>
chip_gen: v5e
topology: v5e:2x2
jax: 0.10.0
libtpu: 0.0.40
codegen_flags: <defaults>
</compile_context>

<pallas_src>
import jax
import jax.numpy as jnp
from jax.experimental import pallas as pl
from jax.experimental.pallas import tpu as pltpu

EPS = 1e-5  # both InstanceNorm2d and LayerNorm default eps


# --------------------------------------------------------------------------- #
# Pass 1: per-(n, c) sum and sum-of-squares over HW, accumulated across tiles. #
# --------------------------------------------------------------------------- #
def _stats_kernel(x_ref, s_ref):
    t = pl.program_id(1)
    x = x_ref[...].astype(jnp.float32)                     # (C, T)
    ps = jnp.sum(x, axis=1, keepdims=True)                 # (C, 1)
    pss = jnp.sum(x * x, axis=1, keepdims=True)            # (C, 1)
    part = jnp.concatenate([ps, pss], axis=1)              # (C, 2)

    @pl.when(t == 0)
    def _():
        s_ref[...] = part

    @pl.when(t > 0)
    def _():
        s_ref[...] += part


# --------------------------------------------------------------------------- #
# Pass 2: per HW tile — form LN operand, two MXU dots with folded weights.     #
# --------------------------------------------------------------------------- #
def _apply_kernel(x_ref, lnw_ref, lnb_ref, w1_ref, w2_ref, aux_ref, o_ref):
    x = x_ref[...].astype(jnp.float32)                     # (C, T)
    lnw = lnw_ref[...].astype(jnp.float32)                 # (C, T)
    lnb = lnb_ref[...].astype(jnp.float32)                 # (C, T)

    b0 = aux_ref[:, 0:1]                                   # beta - folded IN mean term (C,1)
    mu = aux_ref[:, 1:2]                                   # LayerNorm mean (broadcast)  (C,1)
    s = aux_ref[:, 2:3]                                    # LayerNorm inv-std           (C,1)

    # LN operand (single pass, no separate IN/LN temporaries beyond the dot operand)
    ln = (x - mu) * (s * lnw) + lnb                        # (C, T), f32

    mxu = w1_ref.dtype                                     # bf16 (default) or f32
    acc = jnp.dot(w1_ref[...], x.astype(mxu),
                  preferred_element_type=jnp.float32)      # gamma*W1*r_c  @ x
    acc = acc + jnp.dot(w2_ref[...], ln.astype(mxu),
                        preferred_element_type=jnp.float32)  # gamma*W2 @ LN
    o_ref[...] = (acc + b0).astype(o_ref.dtype)


# --------------------------------------------------------------------------- #
# Tile / VMEM-budget helpers                                                   #
# --------------------------------------------------------------------------- #
def _pick_tile_hw(hw, c, target_lanes=2048, budget_bytes=24 * 2 ** 20):
    """Largest multiple-of-128 divisor of hw, capped by a conservative VMEM budget
    (re-derived per shape, safe for v7x's 64 MiB VMEM). Falls back to full hw."""
    per_lane = 40 * max(c, 1)          # streams (x/out/lnw/lnb, double-buffered) + f32 temps
    cap = max(128, (budget_bytes // per_lane) // 128 * 128)
    target = min(target_lanes, cap)
    if hw <= target:
        return hw
    t = (min(target, hw) // 128) * 128
    while t >= 128:
        if hw % t == 0:
            return t
        t -= 128
    return hw                          # no multiple-of-128 divisor: full dim is always legal


def _vmem_limit(c, tile, in_bytes, out_bytes=4):
    per_step = c * tile * (in_bytes + out_bytes + 2 + 2)   # x, out, lnw(bf16), lnb(bf16)
    temps = 4 * c * tile * 4                               # f32 intermediates
    est = 2 * per_step + temps + 8 * c * c + (1 << 20)
    return int(min(max(2 * est, 32 * 2 ** 20), 64 * 2 ** 20))


# --------------------------------------------------------------------------- #
# Wrapper                                                                      #
# --------------------------------------------------------------------------- #
def adapolin(x, style_proj, ln_w, ln_b, conv_w_sn, *, tile_hw=None,
             mxu_dtype=jnp.bfloat16):
    """x: (N, C, H, W); style_proj: (N, 2C) after affine; conv_w_sn: (C, 2C)."""
    N, C, H, W = x.shape
    HW = H * W
    x2 = x.reshape(N, C, HW)
    if tile_hw is None:
        tile_hw = _pick_tile_hw(HW, C)
    assert HW % tile_hw == 0, (HW, tile_hw)
    T = HW // tile_hw
    itemsize = x.dtype.itemsize
    vmem_bytes = _vmem_limit(C, tile_hw, itemsize)

    # ---- pass 1: statistics (single read of x, one-pass sum / sumsq) ----
    stats = pl.pallas_call(
        _stats_kernel,
        out_shape=jax.ShapeDtypeStruct((N, C, 2), jnp.float32),
        grid=(N, T),
        in_specs=[pl.BlockSpec((None, C, tile_hw), lambda n, t: (n, 0, t))],
        out_specs=pl.BlockSpec((None, C, 2), lambda n, t: (n, 0, 0)),
        compiler_params=pltpu.CompilerParams(
            dimension_semantics=("parallel", "arbitrary"),
            vmem_limit_bytes=vmem_bytes),
        cost_estimate=pl.CostEstimate(
            flops=int(3 * N * C * HW), transcendentals=0,
            bytes_accessed=int(N * C * HW * itemsize + N * C * 2 * 4)),
    )(x2)

    # ---- tiny per-sample glue (O(N*C^2)) : derive norms, fold gamma / r_c ----
    sum_c = stats[..., 0]
    sumsq_c = stats[..., 1]
    mean_c = sum_c / HW                                               # (N, C)
    var_c = jnp.maximum(sumsq_c / HW - mean_c * mean_c, 0.0)
    r_c = jax.lax.rsqrt(var_c + EPS)                                  # IN inv-std (N, C)

    mu = jnp.sum(sum_c, axis=1) / (C * HW)                            # (N,)
    var = jnp.maximum(jnp.sum(sumsq_c, axis=1) / (C * HW) - mu * mu, 0.0)
    s = jax.lax.rsqrt(var + EPS)                                      # LN inv-std (N,)

    gamma = style_proj[:, :C].astype(jnp.float32)
    beta = style_proj[:, C:].astype(jnp.float32)
    w1 = conv_w_sn[:, :C].astype(jnp.float32)                         # acts on IN half
    w2 = conv_w_sn[:, C:].astype(jnp.float32)                         # acts on LN half

    w1eff = (gamma[:, :, None] * w1[None, :, :] * r_c[:, None, :]).astype(mxu_dtype)
    w2eff = (gamma[:, :, None] * w2[None, :, :]).astype(mxu_dtype)
    b0 = beta - gamma * jnp.einsum('oc,nc->no', w1, mean_c * r_c)     # (N, C)
    aux = jnp.stack([b0,
                     jnp.broadcast_to(mu[:, None], (N, C)),
                     jnp.broadcast_to(s[:, None], (N, C))],
                    axis=-1).astype(jnp.float32)                      # (N, C, 3)

    lnw2 = ln_w.reshape(C, HW).astype(mxu_dtype)
    lnb2 = ln_b.reshape(C, HW).astype(mxu_dtype)
    mxu_b = jnp.dtype(mxu_dtype).itemsize

    # ---- pass 2: normalize + 1x1 conv + modulation, tile by tile ----
    out = pl.pallas_call(
        _apply_kernel,
        out_shape=jax.ShapeDtypeStruct((N, C, HW), x.dtype),
        grid=(N, T),
        in_specs=[
            pl.BlockSpec((None, C, tile_hw), lambda n, t: (n, 0, t)),   # x tile
            pl.BlockSpec((C, tile_hw), lambda n, t: (0, t)),            # LN weight tile
            pl.BlockSpec((C, tile_hw), lambda n, t: (0, t)),            # LN bias tile
            pl.BlockSpec((None, C, C), lambda n, t: (n, 0, 0)),         # gamma*r_c folded W1
            pl.BlockSpec((None, C, C), lambda n, t: (n, 0, 0)),         # gamma folded W2
            pl.BlockSpec((None, C, 3), lambda n, t: (n, 0, 0)),         # [bias, mu, inv-std]
        ],
        out_specs=pl.BlockSpec((None, C, tile_hw), lambda n, t: (n, 0, t)),
        compiler_params=pltpu.CompilerParams(
            dimension_semantics=("parallel", "parallel"),
            vmem_limit_bytes=vmem_bytes),
        cost_estimate=pl.CostEstimate(
            flops=int(N * (4 * C * C * HW + 6 * C * HW)),
            transcendentals=0,
            bytes_accessed=int(N * C * HW * 2 * itemsize        # x in, out
                               + N * C * HW * 2 * mxu_b         # lnw, lnb streams
                               + 2 * N * C * C * mxu_b)),
    )(x2, lnw2, lnb2, w1eff, w2eff, aux)
    return out.reshape(N, C, H, W)


def spectral_normalize(w, key, n_iter=10):
    """Spectral norm of the 1x1 conv weight (C_out, C_in) via power iteration
    (mirrors torch.nn.utils.spectral_norm's W / sigma, converged at setup time)."""
    u = jax.random.normal(key, (w.shape[0],), dtype=w.dtype)
    u = u / (jnp.linalg.norm(u) + 1e-12)
    v = None
    for _ in range(n_iter):
        v = w.T @ u
        v = v / (jnp.linalg.norm(v) + 1e-12)
        u = w @ v
        u = u / (jnp.linalg.norm(u) + 1e-12)
    sigma = u @ (w @ v)
    return w / sigma


if __name__ == "__main__":
    key = jax.random.PRNGKey(0)
    N, C, H, W = 2, 4, 16, 16      # channels=4, resolution=16
    STYLE_DIM = 8                  # affine=True path
    k = jax.random.split(key, 8)

    # inputs
    x = jax.random.normal(k[0], (N, C, H, W), jnp.float32)
    style = jax.random.normal(k[1], (N, STYLE_DIM), jnp.float32)

    # parameters (deterministic synthetic init, shapes from the module's __init__)
    ln_w = 1.0 + 0.1 * jax.random.normal(k[2], (C, H, W), jnp.float32)   # LayerNorm.weight
    ln_b = 0.1 * jax.random.normal(k[3], (C, H, W), jnp.float32)         # LayerNorm.bias
    conv_w = 0.1 * jax.random.normal(k[4], (C, 2 * C), jnp.float32)      # Conv2d(2C, C, 1).weight
    conv_w_sn = spectral_normalize(conv_w, k[5])
    aff_w = 0.1 * jax.random.normal(k[6], (2 * C, STYLE_DIM), jnp.float32)  # nn.Linear(style_dim, 2C)
    aff_b = jnp.concatenate([jnp.ones((C,), jnp.float32),
                             jnp.zeros((C,), jnp.float32)])                 # affine_bias init

    # affine style projection (tiny matmul -> plain JAX glue)
    style_proj = style @ aff_w.T + aff_b   # (N, 2C)

    # plain-JAX reference of the full forward (exact PyTorch semantics, f32)
    mean_c = jnp.mean(x, axis=(2, 3), keepdims=True)
    var_c = jnp.mean((x - mean_c) ** 2, axis=(2, 3), keepdims=True)
    IN = (x - mean_c) / jnp.sqrt(var_c + EPS)
    mu = jnp.mean(x, axis=(1, 2, 3), keepdims=True)
    var = jnp.mean((x - mu) ** 2, axis=(1, 2, 3), keepdims=True)
    LN = (x - mu) / jnp.sqrt(var + EPS) * ln_w[None] + ln_b[None]
    LIN = jnp.concatenate([IN, LN], axis=1)
    conv = jnp.einsum('oi,nihw->nohw', conv_w_sn, LIN)
    ref = style_proj[:, :C, None, None] * conv + style_proj[:, C:, None, None]

    # 1) f32-MXU path with tile_hw=128 (2 HW tiles -> exercises the tiled stats
    #    accumulation and multi-tile apply) — tight tolerance.
    out_f32 = jax.block_until_ready(
        adapolin(x, style_proj, ln_w, ln_b, conv_w_sn,
                 tile_hw=128, mxu_dtype=jnp.float32))
    err_f32 = float(jnp.max(jnp.abs(out_f32 - ref)))
    assert jnp.allclose(out_f32, ref, atol=2e-3, rtol=2e-3), err_f32

    # 2) default production config: auto tile, bf16 MXU operands & bf16 LN params
    #    — looser tolerance due to bf16 rounding.
    out_bf16 = jax.block_until_ready(
        adapolin(x, style_proj, ln_w, ln_b, conv_w_sn))
    err_bf16 = float(jnp.max(jnp.abs(out_bf16 - ref)))
    assert jnp.allclose(out_bf16, ref, atol=5e-2, rtol=5e-2), err_bf16

    print("KERNEL_OK")
</pallas_src>

<mosaic_0001>
module attributes {stable_mosaic.version = 11 : i64} {
  func.func @_stats_kernel(%arg0: i32, %arg1: i32, %arg2: memref<1x4x128xf32, #tpu.memory_space<vmem>>, %arg3: memref<1x4x2xf32, #tpu.memory_space<vmem>>) attributes {dimension_semantics = [#tpu.dimension_semantics<parallel>, #tpu.dimension_semantics<arbitrary>], iteration_bounds = array<i64: 2, 2>, scalar_prefetch = 0 : i64, scratch_operands = 0 : i64, tpu.core_type = #tpu.core_type<tc>, window_params = [{transform_indices = @transform_0, window_bounds = array<i64: 1, 4, 128>}, {transform_indices = @transform_1, window_bounds = array<i64: 1, 4, 2>}]} {
    %c0 = arith.constant 0 : index
    %c0_0 = arith.constant 0 : index
    %c0_1 = arith.constant 0 : index
    %0 = vector.load %arg2[%c0, %c0_0, %c0_1] : memref<1x4x128xf32, #tpu.memory_space<vmem>>, vector<1x4x128xf32>
    %1 = vector.shape_cast %0 : vector<1x4x128xf32> to vector<4x128xf32>
    %cst = arith.constant dense<0.000000e+00> : vector<4xf32>
    %2 = vector.multi_reduction <add>, %1, %cst [1] : vector<4x128xf32> to vector<4xf32>
    %3 = vector.shape_cast %2 : vector<4xf32> to vector<4x1xf32>
    %4 = arith.mulf %1, %1 : vector<4x128xf32>
    %cst_2 = arith.constant dense<0.000000e+00> : vector<4xf32>
    %5 = vector.multi_reduction <add>, %4, %cst_2 [1] : vector<4x128xf32> to vector<4xf32>
    %6 = vector.shape_cast %5 : vector<4xf32> to vector<4x1xf32>
    %7 = tpu.concatenate %3, %6 in 1 : vector<4x1xf32>, vector<4x1xf32> -> vector<4x2xf32>
    %c0_i32 = arith.constant 0 : i32
    %8 = arith.cmpi eq, %arg1, %c0_i32 : i32
    %9 = arith.extui %8 : i1 to i32
    %c0_i32_3 = arith.constant 0 : i32
    %10 = arith.cmpi ne, %9, %c0_i32_3 : i32
    scf.if %10 {
      %c0_6 = arith.constant 0 : index
      %c0_7 = arith.constant 0 : index
      %c0_8 = arith.constant 0 : index
      %14 = vector.load %arg3[%c0_6, %c0_7, %c0_8] : memref<1x4x2xf32, #tpu.memory_space<vmem>>, vector<1x4x2xf32>
      %15 = vector.shape_cast %14 : vector<1x4x2xf32> to vector<4x2xf32>
      %16 = vector.shape_cast %7 : vector<4x2xf32> to vector<1x4x2xf32>
      tpu.vector_store %arg3[%c0_6, %c0_7, %c0_8], %16 {strides = array<i32>} : memref<1x4x2xf32, #tpu.memory_space<vmem>>, vector<1x4x2xf32>,
    } else {
    }
    %c0_i32_4 = arith.constant 0 : i32
    %11 = arith.cmpi sgt, %arg1, %c0_i32_4 : i32
    %12 = arith.extui %11 : i1 to i32
    %c0_i32_5 = arith.constant 0 : i32
    %13 = arith.cmpi ne, %12, %c0_i32_5 : i32
    scf.if %13 {
      %c0_6 = arith.constant 0 : index
      %c0_7 = arith.constant 0 : index
      %c0_8 = arith.constant 0 : index
      %14 = vector.load %arg3[%c0_6, %c0_7, %c0_8] : memref<1x4x2xf32, #tpu.memory_space<vmem>>, vector<1x4x2xf32>
      %15 = vector.shape_cast %14 : vector<1x4x2xf32> to vector<4x2xf32>
      %16 = arith.addf %15, %7 : vector<4x2xf32>
      %c0_9 = arith.constant 0 : index
      %c0_10 = arith.constant 0 : index
      %c0_11 = arith.constant 0 : index
      %17 = vector.load %arg3[%c0_9, %c0_10, %c0_11] : memref<1x4x2xf32, #tpu.memory_space<vmem>>, vector<1x4x2xf32>
      %18 = vector.shape_cast %17 : vector<1x4x2xf32> to vector<4x2xf32>
      %19 = vector.shape_cast %16 : vector<4x2xf32> to vector<1x4x2xf32>
      tpu.vector_store %arg3[%c0_9, %c0_10, %c0_11], %19 {strides = array<i32>} : memref<1x4x2xf32, #tpu.memory_space<vmem>>, vector<1x4x2xf32>,
    } else {
    }
    return
  }
  func.func @transform_0(%arg0: i32, %arg1: i32) -> (i32, i32, i32) {
    %c0_i32 = arith.constant 0 : i32
    %c0_i32_0 = arith.constant 0 : i32
    return %arg0, %c0_i32, %arg1 : i32, i32, i32
  }
  func.func @transform_1(%arg0: i32, %arg1: i32) -> (i32, i32, i32) {
    %c0_i32 = arith.constant 0 : i32
    %c0_i32_0 = arith.constant 0 : i32
    %c0_i32_1 = arith.constant 0 : i32
    return %arg0, %c0_i32, %c0_i32_0 : i32, i32, i32
  }
}

</mosaic_0001>

<llo_original>
// kernel: tpu_custom_call.1
$region0: #{tpu_custom_call.1}
  #allocation0 [shape = 'u32[]', space=smem, size = 0x4, offset = 0x4, fixed_abs, tag = 'smem constant byte address 0x4 - core index']
  #allocation1 [shape = 'u32[72,128]{1,0:T(1,128)}', space=vmem, size = 0x9000, scoped, tag = 'internal scratch']
  %s0 = inlined_call_operand.hbm [shape: f32[2,4,256], index: 0, kind: input, shape index: {}]
  %s1 = inlined_call_operand.vmem [shape: f32[2,4,2], index: 1, kind: output, shape index: {}]
  %s2 = sld [smem:[#allocation0]]
  $region49: #{tpu_custom_call.1} parent=0
    _
  %s4 = ssub.s32 1, %s2
  %s5 = scalar_select 0, %s4, %s2
  $region1: #{tpu_custom_call.1} parent=0
    #allocation2 [shape = 'u8[4096]{0}', space=vmem, size = 0x1000, scoped, tag = 'input window, operand 0']
    #allocation3 [shape = 's32[2]{0}', space=sflag, size = 0x8, scoped, tag = 'scoped memory for tpu_custom_call.1']
    %6 = vsyncpa [#allocation3], 0
    %s7 = scalar_lea.sflag [#allocation3], 1
    %8 = vsyncpa %s7, 0
    loop: start=0, step=1, limit=6
    $region2: #{tpu_custom_call.1} parent=1 // loop_pre_header
      _
    $region3: #{tpu_custom_call.1} parent=1 // loop_header
      %s10 = sphi 0, %s14
      %p11 = scmp.ge.s32.totalorder %s10, 6
      %s17 = sphi 0, %s29
      %s18 = sphi 0, %s25
      %s19 = sphi 0, %s17
      %s20 = sphi 0, %s18
      %s21 = sphi 0, %s19
      %s22 = sphi 0, %s20
      %s34 = sphi 0, %s36
      %s37 = sphi 0, %s34
      %s38 = sphi 0, %s37
      %s54 = sphi 0, %s38
      %s60 = sphi 0, %s62
      %s63 = sphi 0, %s60
      %s64 = sphi 0, %s63
      %s80 = sphi 0, %s64
    $region4: #{tpu_custom_call.1} parent=1 // loop_header_branch
      %13 = sbr.rel (%p11) target = $region8
    $region5: #{tpu_custom_call.1} parent=1 // loop_body
      %s15 = ssub.s32 %s10, 1
      %s16 = ssub.s32 %s10, 2
      %s23 = sadd.s32 1, %s18
      %p24 = scmp.ge.s32.totalorder %s23, 2
      %s25 = scalar_select %p24, 0, %s23
      %s26 = sadd.s32 1, %s17
      %s27 = scalar_select %p24, %s26, %s17
      %p28 = scmp.ge.s32.totalorder %s27, 2
      %s29 = scalar_select %p28, 0, %s27
      %s30 = ssub.s32 %s17, %s29
      %s31 = ssub.s32 %s18, %s25
      %s32 = sor.u32 %s30, %s31
      %p33 = scmp.eq.s32.totalorder %s32, 0
      %s35 = sadd.s32 %s34, 1
      %s36 = scalar_select %p33, %s34, %s35
      %p39 = pneg %p33
      %p40 = scmp.eq.s32.totalorder %s10, 3
      %p41 = por %p39, %p40
      %p42 = scmp.ne.s32.totalorder %s34, %s37
      %p43 = scmp.eq.s32.totalorder %s10, 0
      %p44 = por %p42, %p43
      %p45 = scmp.ne.s32.totalorder %s34, %s37
      %p46 = scmp.eq.s32.totalorder %s15, 3
      %p47 = por %p45, %p46
      %p48 = scmp.ne.s32.totalorder %s37, %s38
      %p49 = scmp.eq.s32.totalorder %s15, 0
      %p50 = por %p48, %p49
      %p51 = scmp.ne.s32.totalorder %s37, %s38
      %p52 = scmp.eq.s32.totalorder %s16, 3
      %p53 = por %p51, %p52
      %p55 = scmp.ne.s32.totalorder %s38, %s54
      %p56 = scmp.eq.s32.totalorder %s16, 0
      %p57 = por %p55, %p56
      %s58 = ssub.s32 %s17, %s29
      %p59 = scmp.eq.s32.totalorder %s58, 0
      %s61 = sadd.s32 %s60, 1
      %s62 = scalar_select %p59, %s60, %s61
      %p65 = pneg %p59
      %p66 = scmp.eq.s32.totalorder %s10, 3
      %p67 = por %p65, %p66
      %p68 = scmp.ne.s32.totalorder %s60, %s63
      %p69 = scmp.eq.s32.totalorder %s10, 0
      %p70 = por %p68, %p69
      %p71 = scmp.ne.s32.totalorder %s60, %s63
      %p72 = scmp.eq.s32.totalorder %s15, 3
      %p73 = por %p71, %p72
      %p74 = scmp.ne.s32.totalorder %s63, %s64
      %p75 = scmp.eq.s32.totalorder %s15, 0
      %p76 = por %p74, %p75
      %p77 = scmp.ne.s32.totalorder %s63, %s64
      %p78 = scmp.eq.s32.totalorder %s16, 3
      %p79 = por %p77, %p78
      %p81 = scmp.ne.s32.totalorder %s64, %s80
      %p82 = scmp.eq.s32.totalorder %s16, 0
      %p83 = por %p81, %p82
      %p84 = scmp.le.s32.totalorder 1, %s10
      %p85 = scmp.lt.s32.totalorder %s10, 5
      %p86 = pnand %p84, %p85
      %p87 = pneg %p86
      // Predicated region
      $region9: #{tpu_custom_call.1} parent=5 // pred_check
        _
      $region10: #{tpu_custom_call.1} parent=5 // pred_check_branch
        %89 = sbr.rel (%p86) target = $region12
      $region11: #{tpu_custom_call.1} parent=5 // pred_region
        %s90 = ssub.s32 %s10, 1
      $region12: #{tpu_custom_call.1} parent=5 // pred_fallthru
        _
      %p91 = scmp.lt.s32.totalorder %s10, 4
      // Predicated region
      $region13: #{tpu_custom_call.1} parent=5 // pred_check
        %p92 = pneg %p91
      $region14: #{tpu_custom_call.1} parent=5 // pred_check_branch
        %94 = sbr.rel (%p92) target = $region16
      $region15: #{tpu_custom_call.1} parent=5 // pred_region
        // Predicated region
        $region17: #{tpu_custom_call.1} parent=15 // pred_check
          %p95 = pneg %p44
        $region18: #{tpu_custom_call.1} parent=15 // pred_check_branch
          %97 = sbr.rel (%p95) target = $region20
        $region19: #{tpu_custom_call.1} parent=15 // pred_region
          %s98 = sand.u32 %s34, 1
          %s99 = scalar_lea.sflag [#allocation3], %s98
          %s100 = sand.u32 %s34, 1
          %s101 = smul.addr %s100, 4
          %s102 = scalar_lea.vmem [#allocation2], %s101
          %104 = vsyncadd %s99, 0
          %s105 = smul.addr %s17, 2
          %s106 = sadd.s32 %s18, %s105
          %s107 = smul.addr %s106, 4
          %s108 = scalar_lea.hbm %s0, %s107
          %s110 = sshll.u32 %s108, 4
          %s111 = int_to_ptr.hbm [resolvable:$true] %s110
          %s112 = sshll.u32 %s102, 4
          %s113 = int_to_ptr.vmem [resolvable:$true] %s112
          %115 = dma.hbm_to_vmem [thread:$0]  %s111, 64, %s113, %s99
        $region20: #{tpu_custom_call.1} parent=15 // pred_fallthru
          _
      $region16: #{tpu_custom_call.1} parent=5 // pred_fallthru
        _
      %p116 = scmp.le.s32.totalorder 1, %s10
      %p117 = scmp.lt.s32.totalorder %s10, 5
      %p118 = pnand %p116, %p117
      %p119 = pneg %p118
      // Predicated region
      $region21: #{tpu_custom_call.1} parent=5 // pred_check
        _
      $region22: #{tpu_custom_call.1} parent=5 // pred_check_branch
        %121 = sbr.rel (%p118) target = $region24
      $region23: #{tpu_custom_call.1} parent=5 // pred_region
        %s122 = ssub.s32 %s10, 1
        %s123 = sand.u32 %s37, 1
        %s124 = scalar_lea.sflag [#allocation3], %s123
        %s125 = sand.u32 %s37, 1
        %s126 = smul.addr %s125, 4
        %s127 = scalar_lea.vmem [#allocation2], %s126
        // Predicated region
        $region25: #{tpu_custom_call.1} parent=23 // pred_check
          %p128 = pneg %p50
        $region26: #{tpu_custom_call.1} parent=23 // pred_check_branch
          %130 = sbr.rel (%p128) target = $region28
        $region27: #{tpu_custom_call.1} parent=23 // pred_region
          %132 = dma.done %s124, 64
        $region28: #{tpu_custom_call.1} parent=23 // pred_fallthru
          _
        %s133 = sand.u32 %s37, 1
        %s134 = scalar_lea.sflag [#allocation3], %s133
        %s135 = sand.u32 %s37, 1
        %s136 = smul.addr %s135, 4
        %s137 = scalar_lea.vmem [#allocation2], %s136
        %p138 = pneg %p50
        %p139 = pneg %p47
        %p140 = pneg %p76
        %p141 = pneg %p73
        %p142 = scmp.lt.s32.totalorder %s19, 1
        %s143 = scalar_select %p142, %s19, 1
        %s144 = smul.addr %s143, 4
        %s145 = scalar_lea.vmem %s1, %s144
        %p146 = scmp.lt.s32.totalorder %s19, 1
        %s147 = scalar_select %p146, %s19, 1
        %s148 = smul.addr %s147, 4
        %s149 = scalar_lea.vmem %s1, %s148
        %v150 = vld [vmem:[%s127] sm:$0xf]
        %vm151 = vcmask 1043456
        %v152 = vsel %vm151, %v150, 0.0
        %153 = vadd.xlane.f32.xlu0 %v152
        %v154 = vpop.xlane.xlu0 %153
        %v155 = vmul.f32 %v150, %v150
        %v156 = vsel %vm151, %v155, 0.0
        %157 = vadd.xlane.f32.xlu0 %v156
        %v158 = vpop.xlane.xlu0 %157
        %vm159 = vcmask 7168
        %v160 = vsel %vm159, %v154, %v158
        %p161 = scmp.eq.s32.totalorder %s20, 0
        // Predicated region
        $region29: #{tpu_custom_call.1} parent=23 // pred_check
          %p162 = pneg %p161
        $region30: #{tpu_custom_call.1} parent=23 // pred_check_branch
          %164 = sbr.rel (%p162) target = $region32
        $region31: #{tpu_custom_call.1} parent=23 // pred_region
          %vm165 = vcmask 11264
          %166 = vst.msk [vmem:[%s149] sm:$0xf] %vm165, %v160
        $region32: #{tpu_custom_call.1} parent=23 // pred_fallthru
          _
        %p167 = scmp.gt.s32.totalorder %s20, 0
        // Predicated region
        $region33: #{tpu_custom_call.1} parent=23 // pred_check
          %p168 = pneg %p167
        $region34: #{tpu_custom_call.1} parent=23 // pred_check_branch
          %170 = sbr.rel (%p168) target = $region36
        $region35: #{tpu_custom_call.1} parent=23 // pred_region
          %v171 = vld [vmem:[%s149] sm:$0xf]
          %v172 = vadd.f32 %v171, %v160
          %vm173 = vcmask 11264
          %174 = vst.msk [vmem:[%s149] sm:$0xf] %vm173, %v172
        $region36: #{tpu_custom_call.1} parent=23 // pred_fallthru
          _
        %p175 = scmp.lt.s32.totalorder %s19, 1
        %s176 = scalar_select %p175, %s19, 1
        %s177 = smul.addr %s176, 4
        %s178 = scalar_lea.vmem %s1, %s177
        // Predicated region
        $region37: #{tpu_custom_call.1} parent=23 // pred_check
          %p179 = pneg %p73
        $region38: #{tpu_custom_call.1} parent=23 // pred_check_branch
          %181 = sbr.rel (%p179) target = $region40
        $region39: #{tpu_custom_call.1} parent=23 // pred_region
          _
        $region40: #{tpu_custom_call.1} parent=23 // pred_fallthru
          _
      $region24: #{tpu_custom_call.1} parent=5 // pred_fallthru
        _
      %p182 = scmp.le.s32.totalorder 2, %s10
      // Predicated region
      $region41: #{tpu_custom_call.1} parent=5 // pred_check
        %p183 = pneg %p182
      $region42: #{tpu_custom_call.1} parent=5 // pred_check_branch
        %185 = sbr.rel (%p183) target = $region44
      $region43: #{tpu_custom_call.1} parent=5 // pred_region
        %s186 = ssub.s32 %s10, 2
        // Predicated region
        $region45: #{tpu_custom_call.1} parent=43 // pred_check
          %p187 = pneg %p79
        $region46: #{tpu_custom_call.1} parent=43 // pred_check_branch
          %189 = sbr.rel (%p187) target = $region48
        $region47: #{tpu_custom_call.1} parent=43 // pred_region
          %p190 = scmp.lt.s32.totalorder %s21, 1
          %s191 = scalar_select %p190, %s21, 1
          %s192 = smul.addr %s191, 4
          %s193 = scalar_lea.vmem %s1, %s192
        $region48: #{tpu_custom_call.1} parent=43 // pred_fallthru
          _
      $region44: #{tpu_custom_call.1} parent=5 // pred_fallthru
        _
    $region6: #{tpu_custom_call.1} parent=1 // loop_footer
      %s14 = sadd.s32 1, %s10
    $region7: #{tpu_custom_call.1} parent=1 // loop_footer_branch
      %9 = sbr.rel target = $region3
    $region8: #{tpu_custom_call.1} parent=1 // loop_exit
      _
    %194 = vsyncpa [#allocation3], 1
    %s195 = scalar_lea.sflag [#allocation3], 1
    %196 = vsyncpa %s195, 1

</llo_original>
